<compile_context>
chip_gen: v5e
topology: v5e:2x2
jax: 0.10.0
libtpu: 0.0.40
codegen_flags: <defaults>
</compile_context>

<pallas_src>
import math
import jax
import jax.numpy as jnp
from jax import lax
from jax.experimental import pallas as pl
from jax.experimental.pallas import tpu as pltpu

LN_EPS = 1e-5


def _round_up(n, m):
    return ((n + m - 1) // m) * m


def _vmem_capacity_bytes():
    # Physical VMEM per TensorCore: 128 MiB on v5e/v6e, 64 MiB on v7x.
    try:
        return int(pltpu.get_tpu_info().vmem_capacity_bytes)
    except Exception:
        return 64 << 20          # conservative (v7x-safe) fallback


def _make_kernel(approximate_gelu):
    def projection_head_kernel(x_ref, wp_ref, wf_ref, params_ref, o_ref):
        # Packed resident params (f32): rows = [b_proj, b_fc, ln_gamma, ln_beta]
        b_proj = params_ref[0:1, :]
        b_fc = params_ref[1:2, :]
        gamma = params_ref[2:3, :]
        beta = params_ref[3:4, :]

        # ---- projection = x @ W_proj + b_proj (MXU in operand dtype, f32 accumulate)
        projected = jnp.dot(x_ref[...], wp_ref[...],
                            preferred_element_type=jnp.float32) + b_proj   # (TB, P) f32

        # ---- GELU
        if approximate_gelu:
            # tanh form: transcendental goes to the EUP slot instead of a VALU
            # erf polynomial over the whole (TB, P) f32 block.
            c = math.sqrt(2.0 / math.pi)
            h = 0.5 * projected * (
                1.0 + jnp.tanh(c * (projected + 0.044715 * projected * projected * projected)))
        else:
            # exact erf GELU == PyTorch nn.GELU() default
            h = 0.5 * projected * (1.0 + lax.erf(projected * (1.0 / math.sqrt(2.0))))

        # ---- fc = h @ W_fc + b_fc (feed MXU in the weight dtype, f32 accumulate)
        h = jnp.dot(h.astype(wf_ref.dtype), wf_ref[...],
                    preferred_element_type=jnp.float32) + b_fc

        # ---- Dropout: identity in eval mode.
        # TODO(synk): training-mode dropout would need pltpu.prng_seed / prng_random_bits.

        # ---- residual
        h = h + projected

        # ---- LayerNorm over last dim, two-pass variance (h already resident), f32
        mean = jnp.mean(h, axis=-1, keepdims=True)
        d = h - mean
        var = jnp.mean(d * d, axis=-1, keepdims=True)
        out = d * lax.rsqrt(var + LN_EPS) * gamma + beta

        o_ref[...] = out.astype(o_ref.dtype)

    return projection_head_kernel


def projection_head(x, w_proj, b_proj, w_fc, b_fc, ln_gamma, ln_beta, *,
                    block_b=None, vmem_budget_bytes=None,
                    approximate_gelu=False, mxu_bf16=False):
    """x: (B, E).  w_proj: (E, P) pre-transposed.  w_fc: (P, P) pre-transposed.
    Biases / LN affine params: (1, P).

    approximate_gelu: use the tanh GELU (EUP) instead of exact erf (tiny deviation).
    mxu_bf16: cast x / W_proj / W_fc to bf16 for the MXU (f32 accumulate kept)."""
    B, E = x.shape
    Ew, P = w_proj.shape
    assert Ew == E and w_fc.shape == (P, P)

    out_dtype = x.dtype

    if mxu_bf16 and x.dtype == jnp.float32:
        x = x.astype(jnp.bfloat16)
        w_proj = w_proj.astype(jnp.bfloat16)
        w_fc = w_fc.astype(jnp.bfloat16)

    # ---- pad the embedding dim to the 128-wide lane axis (zero rows in W_proj
    #      contribute nothing, so the math is unchanged).
    E_pad = _round_up(E, 128)
    if E_pad != E:
        x = jnp.pad(x, ((0, 0), (0, E_pad - E)))
        w_proj = jnp.pad(w_proj, ((0, E_pad - E), (0, 0)))

    # ---- pack biases + LN affine params into one resident f32 block: (4, P)
    params = jnp.concatenate([
        b_proj.reshape(1, P).astype(jnp.float32),
        b_fc.reshape(1, P).astype(jnp.float32),
        ln_gamma.reshape(1, P).astype(jnp.float32),
        ln_beta.reshape(1, P).astype(jnp.float32),
    ], axis=0)

    in_itemsize = jnp.dtype(x.dtype).itemsize
    out_itemsize = jnp.dtype(out_dtype).itemsize
    weight_bytes = (E_pad * P * jnp.dtype(w_proj.dtype).itemsize
                    + P * P * jnp.dtype(w_fc.dtype).itemsize
                    + 4 * P * 4)

    def _need(tb):
        return (2 * tb * (E_pad * in_itemsize + P * out_itemsize)   # double-buffered x / out tiles
                + 2 * weight_bytes                                   # resident blocks are still 2x-buffered
                + 4 * tb * P * 4)                                    # f32 intermediates (projected, h, cast, pre-cast out)

    phys_vmem = _vmem_capacity_bytes()
    if vmem_budget_bytes is None:
        # Generous tile budget on 128 MiB parts (v5e/v6e); conservative on 64 MiB v7x.
        vmem_budget_bytes = (48 << 20) if phys_vmem >= (96 << 20) else (24 << 20)

    B8 = _round_up(B, 8)
    if block_b is None:
        # Moderate starting tile (512 typically matches 1024 once the epilogue is
        # the bottleneck) then halve until it fits the budget.
        tb = 512
        while tb > 8 and _need(tb) > vmem_budget_bytes:
            tb //= 2
        # Cap the tile so the grid has >= ~4 steps when the batch allows it:
        # v7x can then shard the parallel batch axis across its 2 TensorCores and
        # DMA overlaps compute instead of collapsing to a single-step pipeline.
        min_steps = 4
        tb_cap = _round_up(max((B + min_steps - 1) // min_steps, 8), 8)
        tb = min(tb, tb_cap)
    else:
        tb = _round_up(block_b, 8)           # honor (8,128) tiling constraint
    tb = min(tb, B8)

    B_pad = _round_up(B, tb)
    if B_pad != B:
        x = jnp.pad(x, ((0, B_pad - B), (0, 0)))
    grid = (B_pad // tb,)

    # VMEM limit from the tile actually chosen, clamped below physical capacity.
    need = _need(tb)
    vmem_limit = int(min(max(need + (8 << 20), 16 << 20), phys_vmem - (4 << 20)))

    tiled = pl.BlockSpec((tb, E_pad), lambda i: (i, 0))
    out_tiled = pl.BlockSpec((tb, P), lambda i: (i, 0))
    resident = lambda shape: pl.BlockSpec(shape, lambda i: (0, 0))

    out_pad = pl.pallas_call(
        _make_kernel(approximate_gelu),
        out_shape=jax.ShapeDtypeStruct((B_pad, P), out_dtype),
        grid_spec=pltpu.PrefetchScalarGridSpec(
            num_scalar_prefetch=0,
            grid=grid,
            in_specs=[
                tiled,                    # x tile        (TB, E_pad)
                resident((E_pad, P)),     # w_proj        resident across steps
                resident((P, P)),         # w_fc          resident across steps
                resident((4, P)),         # packed b_proj / b_fc / gamma / beta (f32)
            ],
            out_specs=out_tiled,
        ),
        compiler_params=pltpu.CompilerParams(
            dimension_semantics=(pltpu.PARALLEL,),   # batch axis shardable across TCs
            vmem_limit_bytes=vmem_limit,
        ),
    )(x, w_proj, w_fc, params)

    return out_pad[:B]


if __name__ == "__main__":
    # Small shapes consistent with the module: embedding_dim=64,
    # projection_dim=256 (CFG.projection_dim).  E=64 exercises the wrapper's
    # lane padding to 128.
    B, E, P = 8, 64, 256

    key = jax.random.PRNGKey(0)
    kx, kwp, kbp, kwf, kbf, kx2 = jax.random.split(key, 6)

    x = jax.random.normal(kx, (B, E), dtype=jnp.float32)

    # Deterministic parameter init (PyTorch-Linear-like uniform bounds),
    # weights stored pre-transposed as (in, out).
    bound_p = 1.0 / math.sqrt(E)
    w_proj = jax.random.uniform(kwp, (E, P), jnp.float32, -bound_p, bound_p)
    b_proj = jax.random.uniform(kbp, (1, P), jnp.float32, -bound_p, bound_p)

    bound_f = 1.0 / math.sqrt(P)
    w_fc = jax.random.uniform(kwf, (P, P), jnp.float32, -bound_f, bound_f)
    b_fc = jax.random.uniform(kbf, (1, P), jnp.float32, -bound_f, bound_f)

    ln_gamma = jnp.ones((1, P), jnp.float32)
    ln_beta = jnp.zeros((1, P), jnp.float32)

    # ---- pure-JAX f32 reference (exact GELU, two-pass LayerNorm)
    def ref_fn(xx):
        projected = xx @ w_proj + b_proj
        h = 0.5 * projected * (1.0 + lax.erf(projected / math.sqrt(2.0)))
        h = h @ w_fc + b_fc
        h = h + projected
        mu = h.mean(-1, keepdims=True)
        var = ((h - mu) ** 2).mean(-1, keepdims=True)
        return (h - mu) / jnp.sqrt(var + LN_EPS) * ln_gamma + ln_beta

    ref = ref_fn(x)

    # ---- f32 run (tight tolerance, single grid step)
    out = projection_head(x, w_proj, b_proj, w_fc, b_fc, ln_gamma, ln_beta)
    jax.block_until_ready(out)
    assert out.shape == (B, P)
    assert jnp.allclose(out, ref, atol=1e-4, rtol=1e-4), float(jnp.max(jnp.abs(out - ref)))

    # ---- multi-step pipelined grid (grid >= 4 steps via the tile cap)
    B2 = 64
    x2 = jax.random.normal(kx2, (B2, E), dtype=jnp.float32)
    ref2 = ref_fn(x2)
    out2 = projection_head(x2, w_proj, b_proj, w_fc, b_fc, ln_gamma, ln_beta)
    jax.block_until_ready(out2)
    assert out2.shape == (B2, P)
    assert jnp.allclose(out2, ref2, atol=1e-4, rtol=1e-4), float(jnp.max(jnp.abs(out2 - ref2)))

    # ---- tanh-approx GELU (EUP) — small deviation from exact erf GELU
    out_approx = projection_head(x, w_proj, b_proj, w_fc, b_fc, ln_gamma, ln_beta,
                                 approximate_gelu=True)
    jax.block_until_ready(out_approx)
    assert jnp.allclose(out_approx, ref, atol=5e-2, rtol=5e-2)

    # ---- bf16 operand run (MXU bf16 path, f32 accumulation) — loose tolerance
    out_bf16 = projection_head(x.astype(jnp.bfloat16),
                               w_proj.astype(jnp.bfloat16), b_proj,
                               w_fc.astype(jnp.bfloat16), b_fc,
                               ln_gamma, ln_beta)
    jax.block_until_ready(out_bf16)
    assert out_bf16.dtype == jnp.bfloat16
    assert jnp.allclose(out_bf16.astype(jnp.float32), ref, atol=1e-1, rtol=1e-1)

    # ---- f32 caller, bf16 MXU operands (wrapper cast), f32 output — loose tolerance
    out_mxu = projection_head(x, w_proj, b_proj, w_fc, b_fc, ln_gamma, ln_beta,
                              mxu_bf16=True)
    jax.block_until_ready(out_mxu)
    assert out_mxu.dtype == jnp.float32
    assert jnp.allclose(out_mxu, ref, atol=1e-1, rtol=1e-1)

    print("KERNEL_OK")
</pallas_src>

<mosaic_0001>
module attributes {stable_mosaic.version = 11 : i64} {
  func.func @projection_head_kernel(%arg0: i32, %arg1: memref<8x128xf32, #tpu.memory_space<vmem>>, %arg2: memref<128x256xf32, #tpu.memory_space<vmem>>, %arg3: memref<256x256xf32, #tpu.memory_space<vmem>>, %arg4: memref<4x256xf32, #tpu.memory_space<vmem>>, %arg5: memref<8x256xf32, #tpu.memory_space<vmem>>) attributes {dimension_semantics = [#tpu.dimension_semantics<parallel>], iteration_bounds = array<i64: 1>, scalar_prefetch = 0 : i64, scratch_operands = 0 : i64, tpu.core_type = #tpu.core_type<tc>, window_params = [{transform_indices = @transform_0, window_bounds = array<i64: 8, 128>}, {pipeline_mode = #tpu.pipeline_mode<synchronous>, transform_indices = @transform_1, window_bounds = array<i64: 128, 256>}, {pipeline_mode = #tpu.pipeline_mode<synchronous>, transform_indices = @transform_2, window_bounds = array<i64: 256, 256>}, {pipeline_mode = #tpu.pipeline_mode<synchronous>, transform_indices = @transform_3, window_bounds = array<i64: 4, 256>}, {transform_indices = @transform_4, window_bounds = array<i64: 8, 256>}]} {
    %c0 = arith.constant 0 : index
    %c0_0 = arith.constant 0 : index
    %0 = vector.load %arg4[%c0, %c0_0] : memref<4x256xf32, #tpu.memory_space<vmem>>, vector<1x256xf32>
    %c1 = arith.constant 1 : index
    %c0_1 = arith.constant 0 : index
    %1 = vector.load %arg4[%c1, %c0_1] : memref<4x256xf32, #tpu.memory_space<vmem>>, vector<1x256xf32>
    %c2 = arith.constant 2 : index
    %c0_2 = arith.constant 0 : index
    %2 = vector.load %arg4[%c2, %c0_2] : memref<4x256xf32, #tpu.memory_space<vmem>>, vector<1x256xf32>
    %c3 = arith.constant 3 : index
    %c0_3 = arith.constant 0 : index
    %3 = vector.load %arg4[%c3, %c0_3] : memref<4x256xf32, #tpu.memory_space<vmem>>, vector<1x256xf32>
    %c0_4 = arith.constant 0 : index
    %c0_5 = arith.constant 0 : index
    %4 = vector.load %arg1[%c0_4, %c0_5] : memref<8x128xf32, #tpu.memory_space<vmem>>, vector<8x128xf32>
    %c0_6 = arith.constant 0 : index
    %c0_7 = arith.constant 0 : index
    %5 = vector.load %arg2[%c0_6, %c0_7] : memref<128x256xf32, #tpu.memory_space<vmem>>, vector<128x256xf32>
    %cst = arith.constant dense<0.000000e+00> : vector<8x256xf32>
    %6 = tpu.matmul %4, %5, %cst {dimension_numbers = #tpu.dot_dimension_numbers<[1], [0], [0], [1], [0, 0, 1, 1], [], []>} : vector<8x128xf32>, vector<128x256xf32>, vector<8x256xf32> -> vector<8x256xf32>
    %7 = vector.broadcast %0 : vector<1x256xf32> to vector<8x256xf32>
    %8 = arith.addf %6, %7 : vector<8x256xf32>
    %cst_8 = arith.constant 5.000000e-01 : f32
    %9 = vector.broadcast %cst_8 : f32 to vector<8x256xf32>
    %10 = arith.mulf %9, %8 : vector<8x256xf32>
    %cst_9 = arith.constant 0.707106769 : f32
    %11 = vector.broadcast %cst_9 : f32 to vector<8x256xf32>
    %12 = arith.mulf %8, %11 : vector<8x256xf32>
    %13 = math.erf %12 : vector<8x256xf32>
    %cst_10 = arith.constant 1.000000e+00 : f32
    %14 = vector.broadcast %cst_10 : f32 to vector<8x256xf32>
    %15 = arith.addf %14, %13 : vector<8x256xf32>
    %16 = arith.mulf %10, %15 : vector<8x256xf32>
    %c0_11 = arith.constant 0 : index
    %c0_12 = arith.constant 0 : index
    %17 = vector.load %arg3[%c0_11, %c0_12] : memref<256x256xf32, #tpu.memory_space<vmem>>, vector<256x256xf32>
    %cst_13 = arith.constant dense<0.000000e+00> : vector<8x256xf32>
    %18 = tpu.matmul %16, %17, %cst_13 {dimension_numbers = #tpu.dot_dimension_numbers<[1], [0], [0], [1], [0, 0, 1, 1], [], []>} : vector<8x256xf32>, vector<256x256xf32>, vector<8x256xf32> -> vector<8x256xf32>
    %19 = vector.broadcast %1 : vector<1x256xf32> to vector<8x256xf32>
    %20 = arith.addf %18, %19 : vector<8x256xf32>
    %21 = arith.addf %20, %8 : vector<8x256xf32>
    %cst_14 = arith.constant dense<0.000000e+00> : vector<8xf32>
    %22 = vector.multi_reduction <add>, %21, %cst_14 [1] : vector<8x256xf32> to vector<8xf32>
    %23 = vector.shape_cast %22 : vector<8xf32> to vector<8x1xf32>
    %cst_15 = arith.constant 2.560000e+02 : f32
    %24 = vector.broadcast %cst_15 : f32 to vector<8x1xf32>
    %25 = arith.divf %23, %24 : vector<8x1xf32>
    %26 = vector.broadcast %25 : vector<8x1xf32> to vector<8x256xf32>
    %27 = arith.subf %21, %26 : vector<8x256xf32>
    %28 = arith.mulf %27, %27 : vector<8x256xf32>
    %cst_16 = arith.constant dense<0.000000e+00> : vector<8xf32>
    %29 = vector.multi_reduction <add>, %28, %cst_16 [1] : vector<8x256xf32> to vector<8xf32>
    %30 = vector.shape_cast %29 : vector<8xf32> to vector<8x1xf32>
    %cst_17 = arith.constant 2.560000e+02 : f32
    %31 = vector.broadcast %cst_17 : f32 to vector<8x1xf32>
    %32 = arith.divf %30, %31 : vector<8x1xf32>
    %cst_18 = arith.constant 9.99999974E-6 : f32
    %33 = vector.broadcast %cst_18 : f32 to vector<8x1xf32>
    %34 = arith.addf %32, %33 : vector<8x1xf32>
    %35 = math.rsqrt %34 : vector<8x1xf32>
    %36 = vector.broadcast %35 : vector<8x1xf32> to vector<8x256xf32>
    %37 = arith.mulf %27, %36 : vector<8x256xf32>
    %38 = vector.broadcast %2 : vector<1x256xf32> to vector<8x256xf32>
    %39 = arith.mulf %37, %38 : vector<8x256xf32>
    %40 = vector.broadcast %3 : vector<1x256xf32> to vector<8x256xf32>
    %41 = arith.addf %39, %40 : vector<8x256xf32>
    %c0_19 = arith.constant 0 : index
    %c0_20 = arith.constant 0 : index
    %42 = vector.load %arg5[%c0_19, %c0_20] : memref<8x256xf32, #tpu.memory_space<vmem>>, vector<8x256xf32>
    tpu.vector_store %arg5[%c0_19, %c0_20], %41 {strides = array<i32>} : memref<8x256xf32, #tpu.memory_space<vmem>>, vector<8x256xf32>,
    return
  }
  func.func @transform_0(%arg0: i32) -> (i32, i32) {
    %c0_i32 = arith.constant 0 : i32
    %c0_i32_0 = arith.constant 0 : i32
    return %arg0, %c0_i32 : i32, i32
  }
  func.func @transform_1(%arg0: i32) -> (i32, i32) {
    %c0_i32 = arith.constant 0 : i32
    %c0_i32_0 = arith.constant 0 : i32
    %c0_i32_1 = arith.constant 0 : i32
    return %c0_i32, %c0_i32_0 : i32, i32
  }
  func.func @transform_2(%arg0: i32) -> (i32, i32) {
    %c0_i32 = arith.constant 0 : i32
    %c0_i32_0 = arith.constant 0 : i32
    %c0_i32_1 = arith.constant 0 : i32
    return %c0_i32, %c0_i32_0 : i32, i32
  }
  func.func @transform_3(%arg0: i32) -> (i32, i32) {
    %c0_i32 = arith.constant 0 : i32
    %c0_i32_0 = arith.constant 0 : i32
    %c0_i32_1 = arith.constant 0 : i32
    return %c0_i32, %c0_i32_0 : i32, i32
  }
  func.func @transform_4(%arg0: i32) -> (i32, i32) {
    %c0_i32 = arith.constant 0 : i32
    %c0_i32_0 = arith.constant 0 : i32
    return %arg0, %c0_i32 : i32, i32
  }
}

</mosaic_0001>

<llo_original>
// kernel: tpu_custom_call.1
$region0: #{tpu_custom_call.1}
  #allocation0 [shape = 'u32[]', space=smem, size = 0x4, offset = 0x4, fixed_abs, tag = 'smem constant byte address 0x4 - core index']
  #allocation1 [shape = 'u32[72,128]{1,0:T(1,128)}', space=vmem, size = 0x9000, scoped, tag = 'internal scratch']
  %s0 = inlined_call_operand.hbm [shape: f32[8,128], index: 0, kind: input, shape index: {}]
  %s1 = inlined_call_operand.hbm [shape: f32[128,256], index: 1, kind: input, shape index: {}]
  %s2 = inlined_call_operand.hbm [shape: f32[256,256], index: 2, kind: input, shape index: {}]
  %s3 = inlined_call_operand.hbm [shape: f32[4,256], index: 3, kind: input, shape index: {}]
  %s4 = inlined_call_operand.hbm [shape: f32[8,256], index: 4, kind: output, shape index: {}]
  %s5 = sld [smem:[#allocation0]]
  $region42: #{tpu_custom_call.1} parent=0
    _
  %s7 = ssub.s32 1, %s5
  %s8 = scalar_select 0, %s7, %s5
  $region1: #{tpu_custom_call.1} parent=0
    #allocation2 [shape = 'u8[4096]{0}', space=vmem, size = 0x1000, scoped, tag = 'input window, operand 0, single buffered']
    #allocation3 [shape = 's32[1]{0}', space=sflag, size = 0x4, scoped, tag = 'scoped memory for tpu_custom_call.1']
    #allocation4 [shape = 's32[1]{0}', space=sflag, size = 0x4, scoped, tag = 'scoped memory for tpu_custom_call.1']
    #allocation5 [shape = 'u8[131072]{0}', space=vmem, size = 0x20000, scoped, tag = 'input window, operand 1, single buffered']
    #allocation6 [shape = 's32[1]{0}', space=sflag, size = 0x4, scoped, tag = 'scoped memory for tpu_custom_call.1']
    #allocation7 [shape = 'u8[262144]{0}', space=vmem, size = 0x40000, scoped, tag = 'input window, operand 2, single buffered']
    #allocation8 [shape = 'u8[4096]{0}', space=vmem, size = 0x1000, scoped, tag = 'input window, operand 3, single buffered']
    #allocation9 [shape = 's32[1]{0}', space=sflag, size = 0x4, scoped, tag = 'scoped memory for tpu_custom_call.1']
    #allocation10 [shape = 'u8[8192]{0}', space=vmem, size = 0x2000, scoped, tag = 'output window, operand 0, single buffered']
    %9 = vsyncpa [#allocation3], 0
    %10 = vsyncpa [#allocation6], 0
    %11 = vsyncpa [#allocation9], 0
    %12 = vsyncpa [#allocation4], 0
    // Predicated region
    $region2: #{tpu_custom_call.1} parent=1 // pred_check
      _
    $region3: #{tpu_custom_call.1} parent=1 // pred_check_branch
      %14 = sbr.rel (0) target = $region5
    $region4: #{tpu_custom_call.1} parent=1 // pred_region
      %16 = vsyncadd [#allocation3], 0
      %s18 = sshll.u32 %s0, 4
      %s19 = int_to_ptr.hbm [resolvable:$true] %s18
      %s20 = sshll.u32 [#allocation2], 4
      %s21 = int_to_ptr.vmem [resolvable:$true] %s20
      %23 = dma.hbm_to_vmem [thread:$0]  %s19, 128, %s21, [#allocation3]
    $region5: #{tpu_custom_call.1} parent=1 // pred_fallthru
      _
    // Predicated region
    $region6: #{tpu_custom_call.1} parent=1 // pred_check
      _
    $region7: #{tpu_custom_call.1} parent=1 // pred_check_branch
      %25 = sbr.rel (0) target = $region9
    $region8: #{tpu_custom_call.1} parent=1 // pred_region
      %27 = vsyncadd [#allocation6], 0
      %s28 = sshll.u32 %s1, 4
      %s29 = int_to_ptr.hbm [resolvable:$true] %s28
      %s30 = sshll.u32 [#allocation5], 4
      %s31 = int_to_ptr.vmem [resolvable:$true] %s30
      %36 = dma.hbm_to_vmem [thread:$0]  %s29, 4096, %s31, [#allocation6], 256, 256, 16
    $region9: #{tpu_custom_call.1} parent=1 // pred_fallthru
      _
    // Predicated region
    $region10: #{tpu_custom_call.1} parent=1 // pred_check
      _
    $region11: #{tpu_custom_call.1} parent=1 // pred_check_branch
      %38 = sbr.rel (0) target = $region13
    $region12: #{tpu_custom_call.1} parent=1 // pred_region
      %40 = vsyncadd [#allocation6], 0
      %s41 = sshll.u32 %s2, 4
      %s42 = int_to_ptr.hbm [resolvable:$true] %s41
      %s43 = sshll.u32 [#allocation7], 4
      %s44 = int_to_ptr.vmem [resolvable:$true] %s43
      %49 = dma.hbm_to_vmem [thread:$0]  %s42, 8192, %s44, [#allocation6], 256, 256, 16
    $region13: #{tpu_custom_call.1} parent=1 // pred_fallthru
      _
    // Predicated region
    $region14: #{tpu_custom_call.1} parent=1 // pred_check
      _
    $region15: #{tpu_custom_call.1} parent=1 // pred_check_branch
      %51 = sbr.rel (0) target = $region17
    $region16: #{tpu_custom_call.1} parent=1 // pred_region
      %53 = vsyncadd [#allocation9], 0
      %s55 = sshll.u32 %s3, 4
      %s56 = int_to_ptr.hbm [resolvable:$true] %s55
      %s57 = sshll.u32 [#allocation8], 4
      %s58 = int_to_ptr.vmem [resolvable:$true] %s57
      %60 = dma.hbm_to_vmem [thread:$0]  %s56, 128, %s58, [#allocation9]
    $region17: #{tpu_custom_call.1} parent=1 // pred_fallthru
      _
    // Predicated region
    $region18: #{tpu_custom_call.1} parent=1 // pred_check
      _
    $region19: #{tpu_custom_call.1} parent=1 // pred_check_branch
      %62 = sbr.rel (0) target = $region21
    $region20: #{tpu_custom_call.1} parent=1 // pred_region
      %64 = dma.done [#allocation3], 128
    $region21: #{tpu_custom_call.1} parent=1 // pred_fallthru
      _
    // Predicated region
    $region22: #{tpu_custom_call.1} parent=1 // pred_check
      _
    $region23: #{tpu_custom_call.1} parent=1 // pred_check_branch
      %66 = sbr.rel (0) target = $region25
    $region24: #{tpu_custom_call.1} parent=1 // pred_region
      %68 = dma.done [#allocation6], 4096
    $region25: #{tpu_custom_call.1} parent=1 // pred_fallthru
      _
    // Predicated region
    $region26: #{tpu_custom_call.1} parent=1 // pred_check
      _
    $region27: #{tpu_custom_call.1} parent=1 // pred_check_branch
      %70 = sbr.rel (0) target = $region29
    $region28: #{tpu_custom_call.1} parent=1 // pred_region
      %72 = dma.done [#allocation6], 8192
    $region29: #{tpu_custom_call.1} parent=1 // pred_fallthru
      _
    // Predicated region
    $region30: #{tpu_custom_call.1} parent=1 // pred_check
      _
    $region31: #{tpu_custom_call.1} parent=1 // pred_check_branch
      %74 = sbr.rel (0) target = $region33
    $region32: #{tpu_custom_call.1} parent=1 // pred_region
      %76 = dma.done [#allocation9], 128
    $region33: #{tpu_custom_call.1} parent=1 // pred_fallthru
      _
    %v77 = vld [vmem:[#allocation8] ss:$4 sm:$0x3]
    %s78 = scalar_lea.vmem [#allocation8], 1
    %v79 = vld [vmem:[%s78] ss:$4 sm:$0x3]
    %s80 = scalar_lea.vmem [#allocation8], 2
    %v81 = vld [vmem:[%s80] ss:$4 sm:$0x3]
    %s82 = scalar_lea.vmem [#allocation8], 3
    %v83 = vld [vmem:[%s82] ss:$4 sm:$0x3]
    %v84 = vld [vmem:[#allocation2] sm:$0xff]
    %v85 = vld [vmem:[#allocation5] sm:$0xff]
    %v86 = vld [vmem:[#allocation5 + $0x8] sm:$0xff]
    %v87 = vld [vmem:[#allocation5 + $0x10] sm:$0xff]
    %v88 = vld [vmem:[#allocation5 + $0x18] sm:$0xff]
    %v89 = vld [vmem:[#allocation5 + $0x20] sm:$0xff]
    %v90 = vld [vmem:[#allocation5 + $0x28] sm:$0xff]
    %v91 = vld [vmem:[#allocation5 + $0x30] sm:$0xff]
    %v92 = vld [vmem:[#allocation5 + $0x38] sm:$0xff]
    %v93 = vld [vmem:[#allocation5 + $0x40] sm:$0xff]
    %v94 = vld [vmem:[#allocation5 + $0x48] sm:$0xff]
    %v95 = vld [vmem:[#allocation5 + $0x50] sm:$0xff]
    %v96 = vld [vmem:[#allocation5 + $0x58] sm:$0xff]
    %v97 = vld [vmem:[#allocation5 + $0x60] sm:$0xff]
    %v98 = vld [vmem:[#allocation5 + $0x68] sm:$0xff]
    %v99 = vld [vmem:[#allocation5 + $0x70] sm:$0xff]
    %v100 = vld [vmem:[#allocation5 + $0x78] sm:$0xff]
    %v101 = vld [vmem:[#allocation5 + $0x80] sm:$0xff]
    %v102 = vld [vmem:[#allocation5 + $0x88] sm:$0xff]
    %v103 = vld [vmem:[#allocation5 + $0x90] sm:$0xff]
    %v104 = vld [vmem:[#allocation5 + $0x98] sm:$0xff]
    %v105 = vld [vmem:[#allocation5 + $0xa0] sm:$0xff]
    %v106 = vld [vmem:[#allocation5 + $0xa8] sm:$0xff]
    %v107 = vld [vmem:[#allocation5 + $0xb0] sm:$0xff]
    %v108 = vld [vmem:[#allocation5 + $0xb8] sm:$0xff]
    %v109 = vld [vmem:[#allocation5 + $0xc0] sm:$0xff]
    %v110 = vld [vmem:[#allocation5 + $0xc8] sm:$0xff]
    %v111 = vld [vmem:[#allocation5 + $0xd0] sm:$0xff]
    %v112 = vld [vmem:[#allocation5 + $0xd8] sm:$0xff]
    %v113 = vld [vmem:[#allocation5 + $0xe0] sm:$0xff]
    %v114 = vld [vmem:[#allocation5 + $0xe8] sm:$0xff]
    %v115 = vld [vmem:[#allocation5 + $0xf0] sm:$0xff]
    %v116 = vld [vmem:[#allocation5 + $0xf8] sm:$0xff]
    %v118 = vperm.slane %v77, 0
    %v119 = vperm.slane %v77, 1
    %122 = vmatpush.msra.mxu0 %v115
    %123 = vmatpush.msra.mxu0 %v113
    %124 = vmatpush.msra.mxu0 %v111
    %125 = vmatpush.msra.mxu0 %v109
    %126 = vmatpush.msra.mxu0 %v107
    %127 = vmatpush.msra.mxu0 %v105
    %128 = vmatpush.msra.mxu0 %v103
    %129 = vmatpush.msra.mxu0 %v101
    %130 = vmatpush.msra.mxu0 %v99
    %131 = vmatpush.msra.mxu0 %v97
    %132 = vmatpush.msra.mxu0 %v95
    %133 = vmatpush.msra.mxu0 %v93
    %134 = vmatpush.msra.mxu0 %v91
    %135 = vmatpush.msra.mxu0 %v89
    %136 = vmatpush.msra.mxu0 %v87
    %137 = vmatpush.msra.mxu0 %v85
    %138 = vmatmul.f32.gmra.mxu0 %v84
    %v139 = vpop.f32.mrf.mxu0
    %v140 = vadd.f32 %v118, %v139
    %141 = vdwg.mxu0
    %142 = vmatpush.msra.mxu0 %v116
    %143 = vmatpush.msra.mxu0 %v114
    %144 = vmatpush.msra.mxu0 %v112
    %145 = vmatpush.msra.mxu0 %v110
    %146 = vmatpush.msra.mxu0 %v108
    %147 = vmatpush.msra.mxu0 %v106
    %148 = vmatpush.msra.mxu0 %v104
    %149 = vmatpush.msra.mxu0 %v102
    %150 = vmatpush.msra.mxu0 %v100
    %151 = vmatpush.msra.mxu0 %v98
    %152 = vmatpush.msra.mxu0 %v96
    %153 = vmatpush.msra.mxu0 %v94
    %154 = vmatpush.msra.mxu0 %v92
    %155 = vmatpush.msra.mxu0 %v90
    %156 = vmatpush.msra.mxu0 %v88
    %157 = vmatpush.msra.mxu0 %v86
    %158 = vmatmul.f32.gmra.mxu0 %v84
    %v159 = vpop.f32.mrf.mxu0
    %v160 = vadd.f32 %v119, %v159
    %161 = vdwg.mxu0
    %v162 = vmul.f32 %v140, 0.5
    %v163 = vmul.f32 %v160, 0.5
    %v164 = vmul.f32 %v140, 0.70710677
    %v165 = vmul.f32 %v160, 0.70710677
    %v166 = vmul.f32 %v164, %v164
    %v167 = vmin.f32 16.0, %v166
    %v168 = vmul.f32 %v167, 2.1237322e-06
    %v169 = vadd.f32 %v168, 0.00028619796
    %v170 = vmul.f32 %v167, %v169
    %v171 = vadd.f32 %v170, 0.0036580483
    %v172 = vmul.f32 %v167, %v171
    %v173 = vadd.f32 %v172, 0.05243302
    %v174 = vmul.f32 %v167, %v173
    %v175 = vadd.f32 %v174, 0.18741608
    %v176 = vmul.f32 %v167, %v175
    %v177 = vadd.f32 %v176, 1.1283791
    %v178 = vmul.f32 %v164, %v177
    %v179 = vmul.f32 %v167, 3.8918573e-05
    %v180 = vadd.f32 %v179, 0.001143296
    %v181 = vmul.f32 %v167, %v180
    %v182 = vadd.f32 %v181, 0.014752088
    %v183 = vmul.f32 %v167, %v182
    %v184 = vadd.f32 %v183, 0.112945676
    %v185 = vmul.f32 %v167, %v184
    %v186 = vadd.f32 %v185, 0.4994258
    %v187 = vmul.f32 %v167, %v186
    %v188 = vadd.f32 %v187, 1.0
    %v189 = vrcp.pop %v188
    %v190 = vmul.f32 %v188, %v189
    %v191 = vsub.f32 1.0, %v190
    %v192 = vmul.f32 %v189, %v191
    %v193 = vadd.f32 %v189, %v192
    %vm194 = vweird.f32 %v188
    %vm195 = vweird.f32 %v189
    %vm196 = vmor %vm194, %vm195
    %v197 = vsel %vm196, %v189, %v193
    %v198 = vand.u32 2147483647, %v188
    %vm199 = vcmp.eq.f32.partialorder %v198, 8.507059e+37
    %v200 = vand.u32 %v188, 2147483648
    %v201 = vor.u32 1.1754944e-38, %v200
    %v202 = vsel %vm199, %v201, %v197
    %v203 = vmul.f32 %v178, %v202
    %v204 = vmin.f32 %v203, 1.0
    %v205 = vmax.f32 %v204, -1.0
    %v206 = vmul.f32 %v165, %v165
    %v207 = vmin.f32 16.0, %v206
    %v208 = vmul.f32 %v207, 2.1237322e-06
    %v209 = vadd.f32 %v208, 0.00028619796
    %v210 = vmul.f32 %v207, %v209
    %v211 = vadd.f32 %v210, 0.0036580483
    %v212 = vmul.f32 %v207, %v211
    %v213 = vadd.f32 %v212, 0.05243302
    %v214 = vmul.f32 %v207, %v213
    %v215 = vadd.f32 %v214, 0.18741608
    %v216 = vmul.f32 %v207, %v215
    %v217 = vadd.f32 %v216, 1.1283791
    %v218 = vmul.f32 %v165, %v217
    %v219 = vmul.f32 %v207, 3.8918573e-05
    %v220 = vadd.f32 %v219, 0.001143296
    %v221 = vmul.f32 %v207, %v220
    %v222 = vadd.f32 %v221, 0.014752088
    %v223 = vmul.f32 %v207, %v222
    %v224 = vadd.f32 %v223, 0.112945676
    %v225 = vmul.f32 %v207, %v224
    %v226 = vadd.f32 %v225, 0.4994258
    %v227 = vmul.f32 %v207, %v226
    %v228 = vadd.f32 %v227, 1.0
    %v229 = vrcp.pop %v228
    %v230 = vmul.f32 %v228, %v229
    %v231 = vsub.f32 1.0, %v230
    %v232 = vmul.f32 %v229, %v231
    %v233 = vadd.f32 %v229, %v232
    %vm234 = vweird.f32 %v228
    %vm235 = vweird.f32 %v229
    %vm236 = vmor %vm234, %vm235
    %v237 = vsel %vm236, %v229, %v233
    %v238 = vand.u32 2147483647, %v228
    %vm239 = vcmp.eq.f32.partialorder %v238, 8.507059e+37
    %v240 = vand.u32 %v228, 2147483648
    %v241 = vor.u32 1.1754944e-38, %v240
    %v242 = vsel %vm239, %v241, %v237
    %v243 = vmul.f32 %v218, %v242
    %v244 = vmin.f32 %v243, 1.0
    %v245 = vmax.f32 %v244, -1.0
    %v246 = vadd.f32 %v205, 1.0
    %v247 = vadd.f32 %v245, 1.0
    %v248 = vmul.f32 %v162, %v246
    %v249 = vmul.f32 %v163, %v247
    %v250 = vld [vmem:[#allocation7] sm:$0xff]
    %v251 = vld [vmem:[#allocation7 + $0x8] sm:$0xff]
    %v252 = vld [vmem:[#allocation7 + $0x10] sm:$0xff]
    %v253 = vld [vmem:[#allocation7 + $0x18] sm:$0xff]
    %v254 = vld [vmem:[#allocation7 + $0x20] sm:$0xff]
    %v255 = vld [vmem:[#allocation7 + $0x28] sm:$0xff]
    %v256 = vld [vmem:[#allocation7 + $0x30] sm:$0xff]
    %v257 = vld [vmem:[#allocation7 + $0x38] sm:$0xff]
    %v258 = vld [vmem:[#allocation7 + $0x40] sm:$0xff]
    %v259 = vld [vmem:[#allocation7 + $0x48] sm:$0xff]
    %v260 = vld [vmem:[#allocation7 + $0x50] sm:$0xff]
    %v261 = vld [vmem:[#allocation7 + $0x58] sm:$0xff]
    %v262 = vld [vmem:[#allocation7 + $0x60] sm:$0xff]
    %v263 = vld [vmem:[#allocation7 + $0x68] sm:$0xff]
    %v264 = vld [vmem:[#allocation7 + $0x70] sm:$0xff]
    %v265 = vld [vmem:[#allocation7 + $0x78] sm:$0xff]
    %v266 = vld [vmem:[#allocation7 + $0x80] sm:$0xff]
    %v267 = vld [vmem:[#allocation7 + $0x88] sm:$0xff]
    %v268 = vld [vmem:[#allocation7 + $0x90] sm:$0xff]
    %v269 = vld [vmem:[#allocation7 + $0x98] sm:$0xff]
    %v270 = vld [vmem:[#allocation7 + $0xa0] sm:$0xff]
    %v271 = vld [vmem:[#allocation7 + $0xa8] sm:$0xff]
    %v272 = vld [vmem:[#allocation7 + $0xb0] sm:$0xff]
    %v273 = vld [vmem:[#allocation7 + $0xb8] sm:$0xff]
    %v274 = vld [vmem:[#allocation7 + $0xc0] sm:$0xff]
    %v275 = vld [vmem:[#allocation7 + $0xc8] sm:$0xff]
    %v276 = vld [vmem:[#allocation7 + $0xd0] sm:$0xff]
    %v277 = vld [vmem:[#allocation7 + $0xd8] sm:$0xff]
    %v278 = vld [vmem:[#allocation7 + $0xe0] sm:$0xff]
    %v279 = vld [vmem:[#allocation7 + $0xe8] sm:$0xff]
    %v280 = vld [vmem:[#allocation7 + $0xf0] sm:$0xff]
    %v281 = vld [vmem:[#allocation7 + $0xf8] sm:$0xff]
    %v282 = vld [vmem:[#allocation7 + $0x100] sm:$0xff]
    %v283 = vld [vmem:[#allocation7 + $0x108] sm:$0xff]
    %v284 = vld [vmem:[#allocation7 + $0x110] sm:$0xff]
    %v285 = vld [vmem:[#allocation7 + $0x118] sm:$0xff]
    %v286 = vld [vmem:[#allocation7 + $0x120] sm:$0xff]
    %v287 = vld [vmem:[#allocation7 + $0x128] sm:$0xff]
    %v288 = vld [vmem:[#allocation7 + $0x130] sm:$0xff]
    %v289 = vld [vmem:[#allocation7 + $0x138] sm:$0xff]
    %v290 = vld [vmem:[#allocation7 + $0x140] sm:$0xff]
    %v291 = vld [vmem:[#allocation7 + $0x148] sm:$0xff]
    %v292 = vld [vmem:[#allocation7 + $0x150] sm:$0xff]
    %v293 = vld [vmem:[#allocation7 + $0x158] sm:$0xff]
    %v294 = vld [vmem:[#allocation7 + $0x160] sm:$0xff]
    %v295 = vld [vmem:[#allocation7 + $0x168] sm:$0xff]
    %v296 = vld [vmem:[#allocation7 + $0x170] sm:$0xff]
    %v297 = vld [vmem:[#allocation7 + $0x178] sm:$0xff]
    %v298 = vld [vmem:[#allocation7 + $0x180] sm:$0xff]
    %v299 = vld [vmem:[#allocation7 + $0x188] sm:$0xff]
    %v300 = vld [vmem:[#allocation7 + $0x190] sm:$0xff]
    %v301 = vld [vmem:[#allocation7 + $0x198] sm:$0xff]
    %v302 = vld [vmem:[#allocation7 + $0x1a0] sm:$0xff]
    %v303 = vld [vmem:[#allocation7 + $0x1a8] sm:$0xff]
    %v304 = vld [vmem:[#allocation7 + $0x1b0] sm:$0xff]
    %v305 = vld [vmem:[#allocation7 + $0x1b8] sm:$0xff]
    %v306 = vld [vmem:[#allocation7 + $0x1c0] sm:$0xff]
    %v307 = vld [vmem:[#allocation7 + $0x1c8] sm:$0xff]
    %v308 = vld [vmem:[#allocation7 + $0x1d0] sm:$0xff]
    %v309 = vld [vmem:[#allocation7 + $0x1d8] sm:$0xff]
    %v310 = vld [vmem:[#allocation7 + $0x1e0] sm:$0xff]
    %v311 = vld [vmem:[#allocation7 + $0x1e8] sm:$0xff]
    %v312 = vld [vmem:[#allocation7 + $0x1f0] sm:$0xff]
    %v313 = vld [vmem:[#allocation7 + $0x1f8] sm:$0xff]
    %v315 = vperm.slane %v79, 0
    %v316 = vperm.slane %v79, 1
    %319 = vmatpush.msra.mxu0 %v280
    %320 = vmatpush.msra.mxu0 %v278
    %321 = vmatpush.msra.mxu0 %v276
    %322 = vmatpush.msra.mxu0 %v274
    %323 = vmatpush.msra.mxu0 %v272
    %324 = vmatpush.msra.mxu0 %v270
    %325 = vmatpush.msra.mxu0 %v268
    %326 = vmatpush.msra.mxu0 %v266
    %327 = vmatpush.msra.mxu0 %v264
    %328 = vmatpush.msra.mxu0 %v262
    %329 = vmatpush.msra.mxu0 %v260
    %330 = vmatpush.msra.mxu0 %v258
    %331 = vmatpush.msra.mxu0 %v256
    %332 = vmatpush.msra.mxu0 %v254
    %333 = vmatpush.msra.mxu0 %v252
    %334 = vmatpush.msra.mxu0 %v250
    %335 = vmatmul.f32.gmra.mxu0 %v248
    %v336 = vpop.f32.mrf.mxu0
    %v337 = vadd.f32 %v315, %v336
    %338 = vdwg.mxu0
    %339 = vmatpush.msra.mxu0 %v312
    %340 = vmatpush.msra.mxu0 %v310
    %341 = vmatpush.msra.mxu0 %v308
    %342 = vmatpush.msra.mxu0 %v306
    %343 = vmatpush.msra.mxu0 %v304
    %344 = vmatpush.msra.mxu0 %v302
    %345 = vmatpush.msra.mxu0 %v300
    %346 = vmatpush.msra.mxu0 %v298
    %347 = vmatpush.msra.mxu0 %v296
    %348 = vmatpush.msra.mxu0 %v294
    %349 = vmatpush.msra.mxu0 %v292
    %350 = vmatpush.msra.mxu0 %v290
    %351 = vmatpush.msra.mxu0 %v288
    %352 = vmatpush.msra.mxu0 %v286
    %353 = vmatpush.msra.mxu0 %v284
    %354 = vmatpush.msra.mxu0 %v282
    %355 = vmatmul.f32.gmra.mxu0 %v249
    %v356 = vpop.f32.mrf.mxu0
    %v357 = vadd.f32 %v337, %v356
    %358 = vdwg.mxu0
    %359 = vmatpush.msra.mxu0 %v281
    %360 = vmatpush.msra.mxu0 %v279
    %361 = vmatpush.msra.mxu0 %v277
    %362 = vmatpush.msra.mxu0 %v275
    %363 = vmatpush.msra.mxu0 %v273
    %364 = vmatpush.msra.mxu0 %v271
    %365 = vmatpush.msra.mxu0 %v269
    %366 = vmatpush.msra.mxu0 %v267
    %367 = vmatpush.msra.mxu0 %v265
    %368 = vmatpush.msra.mxu0 %v263
    %369 = vmatpush.msra.mxu0 %v261
    %370 = vmatpush.msra.mxu0 %v259
    %371 = vmatpush.msra.mxu0 %v257
    %372 = vmatpush.msra.mxu0 %v255
    %373 = vmatpush.msra.mxu0 %v253
    %374 = vmatpush.msra.mxu0 %v251
    %375 = vmatmul.f32.gmra.mxu0 %v248
    %v376 = vpop.f32.mrf.mxu0
    %v377 = vadd.f32 %v316, %v376
    %378 = vdwg.mxu0
    %379 = vmatpush.msra.mxu0 %v313
    %380 = vmatpush.msra.mxu0 %v311
    %381 = vmatpush.msra.mxu0 %v309
    %382 = vmatpush.msra.mxu0 %v307
    %383 = vmatpush.msra.mxu0 %v305
    %384 = vmatpush.msra.mxu0 %v303
    %385 = vmatpush.msra.mxu0 %v301
    %386 = vmatpush.msra.mxu0 %v299
    %387 = vmatpush.msra.mxu0 %v297
    %388 = vmatpush.msra.mxu0 %v295
    %389 = vmatpush.msra.mxu0 %v293
    %390 = vmatpush.msra.mxu0 %v291
    %391 = vmatpush.msra.mxu0 %v289
    %392 = vmatpush.msra.mxu0 %v287
    %393 = vmatpush.msra.mxu0 %v285
    %394 = vmatpush.msra.mxu0 %v283
    %395 = vmatmul.f32.gmra.mxu0 %v249
    %v396 = vpop.f32.mrf.mxu0
    %v397 = vadd.f32 %v377, %v396
    %398 = vdwg.mxu0
    %v399 = vadd.f32 %v357, %v140
    %v400 = vadd.f32 %v397, %v160
    %v401 = vadd.f32 %v399, %v400
    %402 = vadd.xlane.f32.xlu0 %v401
    %v403 = vpop.xlane.xlu0 %402
    %v404 = vrcp.pop 256.0
    %v405 = vmul.f32 256.0, %v404
    %v406 = vsub.f32 1.0, %v405
    %v407 = vmul.f32 %v404, %v406
    %v408 = vadd.f32 %v404, %v407
    %vm409 = vweird.f32 %v404
    %v410 = vsel %vm409, %v404, %v408
    %v411 = vmul.f32 %v403, %v410
    %v412 = vsub.f32 %v399, %v411
    %v413 = vsub.f32 %v400, %v411
    %v414 = vmul.f32 %v412, %v412
    %v415 = vmul.f32 %v413, %v413
    %v416 = vadd.f32 %v414, %v415
    %417 = vadd.xlane.f32.xlu0 %v416
    %v418 = vpop.xlane.xlu0 %417
    %v419 = vmul.f32 %v418, %v410
    %v420 = vadd.f32 %v419, 1e-05
    %v421 = vrsqrt.pop %v420
    %v422 = vmul.f32 %v421, %v420
    %v423 = vmul.f32 %v422, %v421
    %v424 = vmul.f32 0.5, %v423
    %v425 = vsub.f32 1.5, %v424
    %v426 = vmul.f32 %v421, %v425
    %vm427 = vweird.f32 %v420
    %vm428 = vweird.f32 %v421
    %vm429 = vmor %vm427, %vm428
    %v430 = vsel %vm429, %v421, %v426
    %v431 = vmul.f32 %v412, %v430
    %v432 = vmul.f32 %v413, %v430
    %v434 = vperm.slane %v81, 0
    %v435 = vperm.slane %v81, 1
    %v438 = vmul.f32 %v431, %v434
    %v439 = vmul.f32 %v432, %v435
    %v441 = vperm.slane %v83, 0
    %v442 = vperm.slane %v83, 1
    %v445 = vadd.f32 %v438, %v441
    %v446 = vadd.f32 %v439, %v442
    %447 = vst [vmem:[#allocation10] sm:$0xff] %v445
    %448 = vst [vmem:[#allocation10 + $0x8] sm:$0xff] %v446
    // Predicated region
    $region34: #{tpu_custom_call.1} parent=1 // pred_check
      _
    $region35: #{tpu_custom_call.1} parent=1 // pred_check_branch
      %450 = sbr.rel (0) target = $region37
    $region36: #{tpu_custom_call.1} parent=1 // pred_region
      %452 = vsyncadd [#allocation4], 0
      %s454 = sshll.u32 [#allocation10], 4
      %s455 = int_to_ptr.vmem [resolvable:$true] %s454
      %s456 = sshll.u32 %s4, 4
      %s457 = int_to_ptr.hbm [resolvable:$true] %s456
      %459 = dma.vmem_to_hbm [thread:$0]  %s455, 256, %s457, [#allocation4]
    $region37: #{tpu_custom_call.1} parent=1 // pred_fallthru
      _
    // Predicated region
    $region38: #{tpu_custom_call.1} parent=1 // pred_check
      _
    $region39: #{tpu_custom_call.1} parent=1 // pred_check_branch
      %461 = sbr.rel (0) target = $region41
    $region40: #{tpu_custom_call.1} parent=1 // pred_region
      %463 = dma.done [#allocation4], 256
    $region41: #{tpu_custom_call.1} parent=1 // pred_fallthru
      _
    %464 = vsyncpa [#allocation3], 1
    %465 = vsyncpa [#allocation6], 1
    %466 = vsyncpa [#allocation9], 1
    %467 = vsyncpa [#allocation4], 1

</llo_original>
